<compile_context>
chip_gen: v7x
topology: tpu7x:2x2x1
jax: 0.10.0
libtpu: 0.0.40
codegen_flags: <defaults>
</compile_context>

<pallas_src>
import jax
import jax.numpy as jnp
from jax.experimental import pallas as pl
from jax.experimental.pallas import tpu as pltpu


def _round_up(x, m):
    return ((x + m - 1) // m) * m


def _embed_gather_kernel(idx_ref, w_ref, o_ref):
    """Gather TB rows of the VMEM-resident table via a one-hot MXU matmul.

    idx_ref: (TB, 1) int32 block of category ids.
    w_ref:   (K, D) full embedding table (same block every step -> loaded once).
    o_ref:   (TB, D) output block.
    """
    idx = idx_ref[...]                                              # (TB, 1)
    tb = idx.shape[0]
    k = w_ref.shape[0]
    iota = jax.lax.broadcasted_iota(jnp.int32, (tb, k), 1)          # (TB, K)
    onehot = (idx == iota).astype(w_ref.dtype)                      # (TB, K)
    o_ref[...] = jnp.dot(
        onehot, w_ref[...], preferred_element_type=jnp.float32
    ).astype(o_ref.dtype)


def cate_bridge_forward(x_cate, emb_weight):
    """Embedding lookup: out[..., :] = emb_weight[x_cate[...], :]."""
    K, D = emb_weight.shape
    dtype = emb_weight.dtype

    idx_flat = x_cate.reshape(-1).astype(jnp.int32)
    B = idx_flat.shape[0]

    # Empty batch: nothing to gather.
    if B == 0:
        return jnp.zeros(x_cate.shape + (D,), dtype=dtype)

    # ---- tile-size selection -----------------------------------------------
    MAX_TB = 4096  # ~1.2 MB f32 output block per step; VMEM stays tiny.
    # Keep >= 2 grid steps once each step still has meaningful work, so both
    # v7x TensorCores are used; single step for small batches.
    n_steps = max(pl.cdiv(B, MAX_TB), 2 if B >= 512 else 1)
    TB = _round_up(pl.cdiv(B, n_steps), 8)
    B_pad = TB * n_steps

    idx2 = idx_flat[:, None]
    if B_pad != B:
        # Pad only the ragged tail; padded rows gather table row 0 and are
        # sliced off below.
        idx2 = jnp.pad(idx2, ((0, B_pad - B), (0, 0)))

    grid_spec = pltpu.PrefetchScalarGridSpec(
        num_scalar_prefetch=0,
        grid=(n_steps,),
        in_specs=[
            # TB indices per step (second-last dim is a multiple of 8).
            pl.BlockSpec((TB, 1), lambda i: (i, 0)),
            # Whole (unpadded) table, same block every step -> one DMA to VMEM.
            pl.BlockSpec((K, D), lambda i: (0, 0)),
        ],
        # Last dim equals the full array dim -> legal; kernel writes exactly
        # D floats per row (no 128-padding, no post-kernel slice over D).
        out_specs=pl.BlockSpec((TB, D), lambda i: (i, 0)),
    )

    cost = pl.CostEstimate(
        flops=2 * B_pad * K * D,
        transcendentals=0,
        bytes_accessed=B_pad * D * 4 + K * D * 4 + B_pad * 4,
    )

    out = pl.pallas_call(
        _embed_gather_kernel,
        out_shape=jax.ShapeDtypeStruct((B_pad, D), dtype),
        grid_spec=grid_spec,
        compiler_params=pltpu.CompilerParams(
            dimension_semantics=("parallel",),
        ),
        cost_estimate=cost,
    )(idx2, emb_weight)

    if B_pad != B:
        out = out[:B]
    return out.reshape(x_cate.shape + (D,))


if __name__ == "__main__":
    # Module hyperparameters (small, consistent with the PyTorch module).
    K = 10           # number of categories
    emb_dim = 8
    D = emb_dim * emb_dim + emb_dim   # 72

    key = jax.random.PRNGKey(0)
    k_w, k_idx = jax.random.split(key)

    # Deterministic parameter init (torch.nn.Embedding default: N(0, 1)).
    emb_weight = jax.random.normal(k_w, (K, D), dtype=jnp.float32)

    # Example categorical indices: a small batch of items.
    x_cate = jax.random.randint(k_idx, (4, 16), minval=0, maxval=K, dtype=jnp.int32)

    out = cate_bridge_forward(x_cate, emb_weight)
    out = jax.block_until_ready(out)

    # Reference check against plain JAX gather.
    ref = jnp.take(emb_weight, x_cate.reshape(-1), axis=0).reshape(x_cate.shape + (D,))
    assert out.shape == x_cate.shape + (D,), out.shape
    assert jnp.allclose(out, ref), "mismatch vs reference embedding lookup"

    print("KERNEL_OK")
</pallas_src>

<mosaic_0001>
module attributes {stable_mosaic.version = 11 : i64} {
  func.func @_embed_gather_kernel(%arg0: i32, %arg1: memref<64x1xi32, #tpu.memory_space<vmem>>, %arg2: memref<10x72xf32, #tpu.memory_space<vmem>>, %arg3: memref<64x72xf32, #tpu.memory_space<vmem>>) attributes {dimension_semantics = [#tpu.dimension_semantics<parallel>], iteration_bounds = array<i64: 1>, scalar_prefetch = 0 : i64, scratch_operands = 0 : i64, tpu.core_type = #tpu.core_type<tc>, window_params = [{transform_indices = @transform_0, window_bounds = array<i64: 64, 1>}, {pipeline_mode = #tpu.pipeline_mode<synchronous>, transform_indices = @transform_1, window_bounds = array<i64: 10, 72>}, {transform_indices = @transform_2, window_bounds = array<i64: 64, 72>}]} {
    %c0 = arith.constant 0 : index
    %c0_0 = arith.constant 0 : index
    %0 = vector.load %arg1[%c0, %c0_0] : memref<64x1xi32, #tpu.memory_space<vmem>>, vector<64x1xi32>
    %1 = tpu.iota {dimensions = array<i32: 1>} : vector<64x10xi32>
    %2 = vector.broadcast %0 : vector<64x1xi32> to vector<64x10xi32>
    %3 = arith.cmpi eq, %2, %1 : vector<64x10xi32>
    %4 = arith.extui %3 : vector<64x10xi1> to vector<64x10xi32>
    %5 = arith.sitofp %4 : vector<64x10xi32> to vector<64x10xf32>
    %c0_1 = arith.constant 0 : index
    %c0_2 = arith.constant 0 : index
    %6 = vector.load %arg2[%c0_1, %c0_2] : memref<10x72xf32, #tpu.memory_space<vmem>>, vector<10x72xf32>
    %cst = arith.constant dense<0.000000e+00> : vector<64x72xf32>
    %7 = tpu.matmul %5, %6, %cst {dimension_numbers = #tpu.dot_dimension_numbers<[1], [0], [0], [1], [0, 0, 1, 1], [], []>} : vector<64x10xf32>, vector<10x72xf32>, vector<64x72xf32> -> vector<64x72xf32>
    %c0_3 = arith.constant 0 : index
    %c0_4 = arith.constant 0 : index
    %8 = vector.load %arg3[%c0_3, %c0_4] : memref<64x72xf32, #tpu.memory_space<vmem>>, vector<64x72xf32>
    tpu.vector_store %arg3[%c0_3, %c0_4], %7 {strides = array<i32>} : memref<64x72xf32, #tpu.memory_space<vmem>>, vector<64x72xf32>,
    return
  }
  func.func @transform_0(%arg0: i32) -> (i32, i32) {
    %c0_i32 = arith.constant 0 : i32
    %c0_i32_0 = arith.constant 0 : i32
    return %arg0, %c0_i32 : i32, i32
  }
  func.func @transform_1(%arg0: i32) -> (i32, i32) {
    %c0_i32 = arith.constant 0 : i32
    %c0_i32_0 = arith.constant 0 : i32
    %c0_i32_1 = arith.constant 0 : i32
    return %c0_i32, %c0_i32_0 : i32, i32
  }
  func.func @transform_2(%arg0: i32) -> (i32, i32) {
    %c0_i32 = arith.constant 0 : i32
    %c0_i32_0 = arith.constant 0 : i32
    return %arg0, %c0_i32 : i32, i32
  }
}

</mosaic_0001>

<llo_original>
// kernel: tpu_custom_call.1
$region0: #{tpu_custom_call.1}
  #allocation0 [shape = 'u32[]', space=smem, size = 0x4, offset = 0x4, fixed_abs, tag = 'smem constant byte address 0x4 - core index']
  #allocation1 [shape = 'u32[144,128]{1,0:T(1,128)}', space=vmem, size = 0x12000, scoped, tag = 'internal scratch']
  %s0 = inlined_call_operand.vmem [shape: s32[64,1], index: 0, kind: input, shape index: {}]
  %s1 = inlined_call_operand.vmem [shape: f32[10,72], index: 1, kind: input, shape index: {}]
  %s2 = inlined_call_operand.hbm [shape: f32[64,72], index: 2, kind: output, shape index: {}]
  %s3 = sld [smem:[#allocation0]]
  $region18: #{tpu_custom_call.1} parent=0
    _
  %s5 = ssub.s32 1, %s3
  %s6 = scalar_select 0, %s5, %s3
  $region1: #{tpu_custom_call.1} parent=0
    #allocation2 [shape = 'u8[32768]{0}', space=vmem, size = 0x8000, scoped, tag = 'output window, operand 0, single buffered']
    #allocation3 [shape = 's32[1]{0}', space=sflag, size = 0x4, scoped, tag = 'scoped memory for tpu_custom_call.1']
    %7 = vsyncpa [#allocation3], 0
    // Predicated region
    $region2: #{tpu_custom_call.1} parent=1 // pred_check
      _
    $region3: #{tpu_custom_call.1} parent=1 // pred_check_branch
      %9 = sbr.rel (0) target = $region5
    $region4: #{tpu_custom_call.1} parent=1 // pred_region
      _
    $region5: #{tpu_custom_call.1} parent=1 // pred_fallthru
      _
    // Predicated region
    $region6: #{tpu_custom_call.1} parent=1 // pred_check
      _
    $region7: #{tpu_custom_call.1} parent=1 // pred_check_branch
      %11 = sbr.rel (0) target = $region9
    $region8: #{tpu_custom_call.1} parent=1 // pred_region
      _
    $region9: #{tpu_custom_call.1} parent=1 // pred_fallthru
      _
    %v12 = vld [vmem:[%s0] sm:$0xff]
    %v13 = vld [vmem:[%s0 + $0x8] sm:$0xff]
    %v14 = vld [vmem:[%s0 + $0x10] sm:$0xff]
    %v15 = vld [vmem:[%s0 + $0x18] sm:$0xff]
    %v16 = vld [vmem:[%s0 + $0x20] sm:$0xff]
    %v17 = vld [vmem:[%s0 + $0x28] sm:$0xff]
    %v18 = vld [vmem:[%s0 + $0x30] sm:$0xff]
    %v19 = vld [vmem:[%s0 + $0x38] sm:$0xff]
    %v20 = vlaneseq
    %v21 = vand.u32 %v20, 127
    %22 = vset.pattern.permute.xlu0 0
    %23 = vperm.xlu0 %22, %v12
    %v24 = vpop.permute.xlu0 %23
    %25 = vset.pattern.permute.xlu0 0
    %26 = vperm.xlu0 %25, %v13
    %v27 = vpop.permute.xlu0 %26
    %28 = vset.pattern.permute.xlu0 0
    %29 = vperm.xlu0 %28, %v14
    %v30 = vpop.permute.xlu0 %29
    %31 = vset.pattern.permute.xlu0 0
    %32 = vperm.xlu0 %31, %v15
    %v33 = vpop.permute.xlu0 %32
    %34 = vset.pattern.permute.xlu0 0
    %35 = vperm.xlu0 %34, %v16
    %v36 = vpop.permute.xlu0 %35
    %37 = vset.pattern.permute.xlu0 0
    %38 = vperm.xlu0 %37, %v17
    %v39 = vpop.permute.xlu0 %38
    %40 = vset.pattern.permute.xlu0 0
    %41 = vperm.xlu0 %40, %v18
    %v42 = vpop.permute.xlu0 %41
    %43 = vset.pattern.permute.xlu0 0
    %44 = vperm.xlu0 %43, %v19
    %v45 = vpop.permute.xlu0 %44
    %vm46 = vcmp.eq.s32.totalorder %v24, %v21
    %vm47 = vcmp.eq.s32.totalorder %v27, %v21
    %vm48 = vcmp.eq.s32.totalorder %v30, %v21
    %vm49 = vcmp.eq.s32.totalorder %v33, %v21
    %vm50 = vcmp.eq.s32.totalorder %v36, %v21
    %vm51 = vcmp.eq.s32.totalorder %v39, %v21
    %vm52 = vcmp.eq.s32.totalorder %v42, %v21
    %vm53 = vcmp.eq.s32.totalorder %v45, %v21
    %v54 = vsel %vm46, 1, 0
    %v55 = vsel %vm47, 1, 0
    %v56 = vsel %vm48, 1, 0
    %v57 = vsel %vm49, 1, 0
    %v58 = vsel %vm50, 1, 0
    %v59 = vsel %vm51, 1, 0
    %v60 = vsel %vm52, 1, 0
    %v61 = vsel %vm53, 1, 0
    %v62 = vcvt.s32.f32 %v54
    %v63 = vcvt.s32.f32 %v55
    %v64 = vcvt.s32.f32 %v56
    %v65 = vcvt.s32.f32 %v57
    %v66 = vcvt.s32.f32 %v58
    %v67 = vcvt.s32.f32 %v59
    %v68 = vcvt.s32.f32 %v60
    %v69 = vcvt.s32.f32 %v61
    %v70 = vld [vmem:[%s1] sm:$0xff]
    %v71 = vld [vmem:[%s1 + $0x8] sm:$0x3]
    %vm72 = vcmask 80896
    %v74 = vsel %vm72, %v62, 0
    %v77 = vsel %vm72, %v63, 0
    %v80 = vsel %vm72, %v64, 0
    %v83 = vsel %vm72, %v65, 0
    %v86 = vsel %vm72, %v66, 0
    %v89 = vsel %vm72, %v67, 0
    %v92 = vsel %vm72, %v68, 0
    %v95 = vsel %vm72, %v69, 0
    %vm97 = vcmask 1041408
    %v99 = vsel %vm97, %v71, 0
    %101 = vmatprep.subr.mxu0 0.0
    %102 = vmatpush1.msra.mxu0 %v70
    %103 = vmatprep.subr.mxu0 0.0
    %104 = vmatpush1.msra.mxu0 %v99
    %105 = vmatprep.subr.mxu0 0.0
    %106 = vmatpush1.msra.mxu0 0.0
    %107 = vmatprep.subr.mxu0 0.0
    %108 = vmatpush1.msra.mxu0 0.0
    %109 = vmatprep.subr.mxu0 0.0
    %110 = vmatpush1.msra.mxu0 0.0
    %111 = vmatprep.subr.mxu0 0.0
    %112 = vmatpush1.msra.mxu0 0.0
    %113 = vmatprep.subr.mxu0 0.0
    %114 = vmatpush1.msra.mxu0 0.0
    %115 = vmatprep.subr.mxu0 0.0
    %116 = vmatpush1.msra.mxu0 0.0
    %117 = vmatprep.subr.mxu0 0.0
    %118 = vmatpush1.msra.mxu0 0.0
    %119 = vmatprep.subr.mxu0 0.0
    %120 = vmatpush1.msra.mxu0 0.0
    %121 = vmatprep.subr.mxu0 0.0
    %122 = vmatpush1.msra.mxu0 0.0
    %123 = vmatprep.subr.mxu0 0.0
    %124 = vmatpush1.msra.mxu0 0.0
    %125 = vmatprep.subr.mxu0 0.0
    %126 = vmatpush1.msra.mxu0 0.0
    %127 = vmatprep.subr.mxu0 0.0
    %128 = vmatpush1.msra.mxu0 0.0
    %129 = vmatprep.subr.mxu0 0.0
    %130 = vmatpush1.msra.mxu0 0.0
    %131 = vmatprep.subr.mxu0 0.0
    %132 = vmatpush1.msra.mxu0 0.0
    %133 = vmatprep.subr.mxu0 0.0
    %134 = vmatpush1.msra.mxu0 0.0
    %135 = vmatprep.subr.mxu0 0.0
    %136 = vmatpush1.msra.mxu0 0.0
    %137 = vmatprep.subr.mxu0 0.0
    %138 = vmatpush1.msra.mxu0 0.0
    %139 = vmatprep.subr.mxu0 0.0
    %140 = vmatpush1.msra.mxu0 0.0
    %141 = vmatprep.subr.mxu0 0.0
    %142 = vmatpush1.msra.mxu0 0.0
    %143 = vmatprep.subr.mxu0 0.0
    %144 = vmatpush1.msra.mxu0 0.0
    %145 = vmatprep.subr.mxu0 0.0
    %146 = vmatpush1.msra.mxu0 0.0
    %147 = vmatprep.subr.mxu0 0.0
    %148 = vmatpush1.msra.mxu0 0.0
    %149 = vmatprep.subr.mxu0 0.0
    %150 = vmatpush1.msra.mxu0 0.0
    %151 = vmatprep.subr.mxu0 0.0
    %152 = vmatpush1.msra.mxu0 0.0
    %153 = vmatprep.subr.mxu0 0.0
    %154 = vmatpush1.msra.mxu0 0.0
    %155 = vmatprep.subr.mxu0 0.0
    %156 = vmatpush1.msra.mxu0 0.0
    %157 = vmatprep.subr.mxu0 0.0
    %158 = vmatpush1.msra.mxu0 0.0
    %159 = vmatprep.subr.mxu0 0.0
    %160 = vmatpush1.msra.mxu0 0.0
    %161 = vmatprep.subr.mxu0 0.0
    %162 = vmatpush1.msra.mxu0 0.0
    %163 = vmatprep.subr.mxu0 0.0
    %164 = vmatpush1.msra.mxu0 0.0
    %165 = vmatprep.mubr.f32.mxu0 0.0
    %166 = vmatmul.mubr.f32.gmra.mrb[0].mxu0 %v74
    %v167 = vpop.f32.mrb[0].mxu0
    %v168 = vadd.f32 0.0, %v167
    %v169 = vpop.f32.mrb[0].mxu0
    %170 = vmatprep.mubr.f32.mxu0 0.0
    %171 = vmatmul.mubr.f32.gmra.mrb[0].mxu0 %v77
    %v172 = vpop.f32.mrb[0].mxu0
    %v173 = vadd.f32 0.0, %v172
    %v174 = vpop.f32.mrb[0].mxu0
    %175 = vmatprep.mubr.f32.mxu0 0.0
    %176 = vmatmul.mubr.f32.gmra.mrb[0].mxu0 %v80
    %v177 = vpop.f32.mrb[0].mxu0
    %v178 = vadd.f32 0.0, %v177
    %v179 = vpop.f32.mrb[0].mxu0
    %180 = vmatprep.mubr.f32.mxu0 0.0
    %181 = vmatmul.mubr.f32.gmra.mrb[0].mxu0 %v83
    %v182 = vpop.f32.mrb[0].mxu0
    %v183 = vadd.f32 0.0, %v182
    %v184 = vpop.f32.mrb[0].mxu0
    %185 = vmatprep.mubr.f32.mxu0 0.0
    %186 = vmatmul.mubr.f32.gmra.mrb[0].mxu0 %v86
    %v187 = vpop.f32.mrb[0].mxu0
    %v188 = vadd.f32 0.0, %v187
    %v189 = vpop.f32.mrb[0].mxu0
    %190 = vmatprep.mubr.f32.mxu0 0.0
    %191 = vmatmul.mubr.f32.gmra.mrb[0].mxu0 %v89
    %v192 = vpop.f32.mrb[0].mxu0
    %v193 = vadd.f32 0.0, %v192
    %v194 = vpop.f32.mrb[0].mxu0
    %195 = vmatprep.mubr.f32.mxu0 0.0
    %196 = vmatmul.mubr.f32.gmra.mrb[0].mxu0 %v92
    %v197 = vpop.f32.mrb[0].mxu0
    %v198 = vadd.f32 0.0, %v197
    %v199 = vpop.f32.mrb[0].mxu0
    %200 = vmatprep.mubr.f32.mxu0 0.0
    %201 = vmatmul.mubr.f32.gmra.mrb[0].mxu0 %v95
    %v202 = vpop.f32.mrb[0].mxu0
    %v203 = vadd.f32 0.0, %v202
    %v204 = vpop.f32.mrb[0].mxu0
    %205 = vdwg.mxu0
    %vm206 = vcmask 588800
    %207 = vst.msk [vmem:[#allocation2] sm:$0xff] %vm206, %v168
    %208 = vst.msk [vmem:[#allocation2 + $0x8] sm:$0xff] %vm206, %v173
    %209 = vst.msk [vmem:[#allocation2 + $0x10] sm:$0xff] %vm206, %v178
    %210 = vst.msk [vmem:[#allocation2 + $0x18] sm:$0xff] %vm206, %v183
    %211 = vst.msk [vmem:[#allocation2 + $0x20] sm:$0xff] %vm206, %v188
    %212 = vst.msk [vmem:[#allocation2 + $0x28] sm:$0xff] %vm206, %v193
    %213 = vst.msk [vmem:[#allocation2 + $0x30] sm:$0xff] %vm206, %v198
    %214 = vst.msk [vmem:[#allocation2 + $0x38] sm:$0xff] %vm206, %v203
    // Predicated region
    $region10: #{tpu_custom_call.1} parent=1 // pred_check
      _
    $region11: #{tpu_custom_call.1} parent=1 // pred_check_branch
      %216 = sbr.rel (0) target = $region13
    $region12: #{tpu_custom_call.1} parent=1 // pred_region
      %s218 = ssub.s32 1024, 1024
      %219 = vsyncadd [#allocation3], %s218
      %s220 = sshll.u32 [#allocation2], 4
      %s221 = int_to_ptr.vmem [resolvable:$true] %s220
      %226 = dma.vmem_to_hbm [thread:$0]  %s221, 1024, %s2, [#allocation3], 128, 128, 8
    $region13: #{tpu_custom_call.1} parent=1 // pred_fallthru
      _
    // Predicated region
    $region14: #{tpu_custom_call.1} parent=1 // pred_check
      _
    $region15: #{tpu_custom_call.1} parent=1 // pred_check_branch
      %228 = sbr.rel (0) target = $region17
    $region16: #{tpu_custom_call.1} parent=1 // pred_region
      %229 = dma.done [#allocation3], 1024
    $region17: #{tpu_custom_call.1} parent=1 // pred_fallthru
      _
    %230 = vsyncpa [#allocation3], 1

</llo_original>
